<compile_context>
chip_gen: v7x
topology: tpu7x:2x2x1
jax: 0.10.0
libtpu: 0.0.40
codegen_flags: <defaults>
</compile_context>

<pallas_src>
import jax
import jax.numpy as jnp
from jax.experimental import pallas as pl
from jax.experimental.pallas import tpu as pltpu

INPUT_SIZE = 100       # logical feature width (PyTorch module)
LATENT_SIZE = 5
HIDDEN_SIZE = 64


def _round_up(n, m):
    return int(pl.cdiv(int(n), m)) * m


def _choose_tile(batch, tile_b):
    """Batch tile: multiple of 8, <= tile_b, and split so the grid has >= 2
    steps whenever the batch allows it (both TCs get work on v7x)."""
    b8 = _round_up(batch, 8)
    tb = min(int(tile_b), b8)
    if tb == b8 and b8 >= 16:
        tb = _round_up((b8 + 1) // 2, 8)
    return tb


def _ae_kernel(x_ref,                       # (TILE_B, 100) f32
               w1_ref, b1_ref,              # (100, 64) bf16, (1, 64) f32
               w23_ref, b23_ref,            # (64, 64) bf16, (1, 64) f32  (folded 64->5->64)
               w4_ref, b4_ref,              # (64, 100) bf16, (1, 100) f32
               out_ref):                    # (TILE_B, 100) bf16
    x = x_ref[...].astype(jnp.bfloat16)

    # encoder Linear(100->64) + ReLU   (bf16 MXU operands, f32 accumulate)
    h = jnp.dot(x, w1_ref[...], preferred_element_type=jnp.float32) + b1_ref[...]
    h = jnp.maximum(h, 0.0)

    # encoder Linear(64->5) and decoder Linear(5->64) folded into one 64x64
    # matmul (no nonlinearity on the latent), then the decoder ReLU.
    g = jnp.dot(h.astype(jnp.bfloat16), w23_ref[...],
                preferred_element_type=jnp.float32) + b23_ref[...]
    g = jnp.maximum(g, 0.0)

    # decoder Linear(64->100)
    y = jnp.dot(g.astype(jnp.bfloat16), w4_ref[...],
                preferred_element_type=jnp.float32) + b4_ref[...]

    out_ref[...] = y.astype(out_ref.dtype)


def init_params(key):
    """PyTorch nn.Linear-style init: U(-1/sqrt(fan_in), 1/sqrt(fan_in)).
    Weights stored already transposed to (in_features, out_features)."""
    dims = [
        ("w1", "b1", INPUT_SIZE, HIDDEN_SIZE),
        ("w2", "b2", HIDDEN_SIZE, LATENT_SIZE),
        ("w3", "b3", LATENT_SIZE, HIDDEN_SIZE),
        ("w4", "b4", HIDDEN_SIZE, INPUT_SIZE),
    ]
    params = {}
    for (wname, bname, fan_in, fan_out) in dims:
        key, kw, kb = jax.random.split(key, 3)
        bound = 1.0 / jnp.sqrt(float(fan_in))
        params[wname] = jax.random.uniform(
            kw, (fan_in, fan_out), jnp.float32, minval=-bound, maxval=bound)
        params[bname] = jax.random.uniform(
            kb, (1, fan_out), jnp.float32, minval=-bound, maxval=bound)
    return params


def prepare_params(params):
    """Fold the 64->5->64 bottleneck in f32 and cast the matmul operands to
    bf16 (biases stay f32 for the f32 VPU epilogue). No feature padding."""
    w23 = params["w2"] @ params["w3"]                       # (64, 64) f32
    b23 = params["b2"] @ params["w3"] + params["b3"]        # (1, 64)  f32
    return {
        "w1": params["w1"].astype(jnp.bfloat16), "b1": params["b1"],
        "w23": w23.astype(jnp.bfloat16),         "b23": b23,
        "w4": params["w4"].astype(jnp.bfloat16), "b4": params["b4"],
    }


def autoencoder_forward(x, prep, tile_b=4096):
    """x: (B, INPUT_SIZE) float32. prep: output of prepare_params.
    Returns (B, INPUT_SIZE) bfloat16."""
    B = x.shape[0]
    tb = _choose_tile(B, tile_b)
    B_pad = _round_up(B, tb)
    if B_pad != B:
        x = jnp.pad(x, ((0, B_pad - B), (0, 0)))   # batch pad only (cheap, rare)

    const = lambda i: (0, 0)          # weights/biases: VMEM-resident, DMA'd once
    grid = (B_pad // tb,)

    flops = 2 * B_pad * (INPUT_SIZE * HIDDEN_SIZE
                         + HIDDEN_SIZE * HIDDEN_SIZE
                         + HIDDEN_SIZE * INPUT_SIZE)
    w_bytes = sum(int(v.size) * v.dtype.itemsize for v in prep.values())
    bytes_accessed = (B_pad * INPUT_SIZE * 4          # x in, f32
                      + B_pad * INPUT_SIZE * 2        # y out, bf16
                      + w_bytes)

    out = pl.pallas_call(
        _ae_kernel,
        out_shape=jax.ShapeDtypeStruct((B_pad, INPUT_SIZE), jnp.bfloat16),
        grid=grid,
        in_specs=[
            pl.BlockSpec((tb, INPUT_SIZE), lambda i: (i, 0)),       # x tile (f32)
            pl.BlockSpec((INPUT_SIZE, HIDDEN_SIZE), const),         # w1
            pl.BlockSpec((1, HIDDEN_SIZE), const),                  # b1
            pl.BlockSpec((HIDDEN_SIZE, HIDDEN_SIZE), const),        # w23
            pl.BlockSpec((1, HIDDEN_SIZE), const),                  # b23
            pl.BlockSpec((HIDDEN_SIZE, INPUT_SIZE), const),         # w4
            pl.BlockSpec((1, INPUT_SIZE), const),                   # b4
        ],
        out_specs=pl.BlockSpec((tb, INPUT_SIZE), lambda i: (i, 0)),
        compiler_params=pltpu.CompilerParams(
            dimension_semantics=("parallel",),      # shard batch tiles across TCs (v7x)
        ),
        cost_estimate=pl.CostEstimate(
            flops=flops, transcendentals=0, bytes_accessed=bytes_accessed),
    )(x,
      prep["w1"], prep["b1"],
      prep["w23"], prep["b23"],
      prep["w4"], prep["b4"])

    if B_pad != B:
        out = out[:B]
    return out


def reference_forward(x, params):
    """Pure-JAX f32 reference of the original (unfused) module."""
    h = jnp.maximum(x @ params["w1"] + params["b1"], 0.0)
    z = h @ params["w2"] + params["b2"]
    g = jnp.maximum(z @ params["w3"] + params["b3"], 0.0)
    return g @ params["w4"] + params["b4"]


if __name__ == "__main__":
    key = jax.random.PRNGKey(0)
    params = init_params(key)
    prep = prepare_params(params)

    # Small case: single grid step (batch fits in one tile).
    key, kx = jax.random.split(key)
    B = 8
    x = jax.random.normal(kx, (B, INPUT_SIZE), jnp.float32)
    out = jax.block_until_ready(autoencoder_forward(x, prep))
    ref = reference_forward(x, params)
    assert out.shape == (B, INPUT_SIZE)
    assert out.dtype == jnp.bfloat16
    # bf16 matmul operands + bf16 output + folded bottleneck -> loosened
    # tolerance vs. the pure-f32 reference.
    assert jnp.allclose(out.astype(jnp.float32), ref, atol=5e-2, rtol=5e-2), (
        float(jnp.max(jnp.abs(out.astype(jnp.float32) - ref))))

    # Second case exercising multi-step grid + batch padding + slice-back.
    key, kx2 = jax.random.split(key)
    B2 = 24
    x2 = jax.random.normal(kx2, (B2, INPUT_SIZE), jnp.float32)
    out2 = jax.block_until_ready(autoencoder_forward(x2, prep))
    ref2 = reference_forward(x2, params)
    assert out2.shape == (B2, INPUT_SIZE)
    assert jnp.allclose(out2.astype(jnp.float32), ref2, atol=5e-2, rtol=5e-2), (
        float(jnp.max(jnp.abs(out2.astype(jnp.float32) - ref2))))

    print("KERNEL_OK")
</pallas_src>

<mosaic_0001>
module attributes {stable_mosaic.version = 11 : i64} {
  func.func @_ae_kernel(%arg0: i32, %arg1: memref<8x100xf32, #tpu.memory_space<vmem>>, %arg2: memref<100x64xbf16, #tpu.memory_space<vmem>>, %arg3: memref<1x64xf32, #tpu.memory_space<vmem>>, %arg4: memref<64x64xbf16, #tpu.memory_space<vmem>>, %arg5: memref<1x64xf32, #tpu.memory_space<vmem>>, %arg6: memref<64x100xbf16, #tpu.memory_space<vmem>>, %arg7: memref<1x100xf32, #tpu.memory_space<vmem>>, %arg8: memref<8x100xbf16, #tpu.memory_space<vmem>>) attributes {dimension_semantics = [#tpu.dimension_semantics<parallel>], iteration_bounds = array<i64: 1>, scalar_prefetch = 0 : i64, scratch_operands = 0 : i64, tpu.core_type = #tpu.core_type<tc>, window_params = [{transform_indices = @transform_0, window_bounds = array<i64: 8, 100>}, {pipeline_mode = #tpu.pipeline_mode<synchronous>, transform_indices = @transform_1, window_bounds = array<i64: 100, 64>}, {pipeline_mode = #tpu.pipeline_mode<synchronous>, transform_indices = @transform_2, window_bounds = array<i64: 1, 64>}, {pipeline_mode = #tpu.pipeline_mode<synchronous>, transform_indices = @transform_3, window_bounds = array<i64: 64, 64>}, {pipeline_mode = #tpu.pipeline_mode<synchronous>, transform_indices = @transform_4, window_bounds = array<i64: 1, 64>}, {pipeline_mode = #tpu.pipeline_mode<synchronous>, transform_indices = @transform_5, window_bounds = array<i64: 64, 100>}, {pipeline_mode = #tpu.pipeline_mode<synchronous>, transform_indices = @transform_6, window_bounds = array<i64: 1, 100>}, {transform_indices = @transform_7, window_bounds = array<i64: 8, 100>}]} {
    %c0 = arith.constant 0 : index
    %c0_0 = arith.constant 0 : index
    %0 = vector.load %arg1[%c0, %c0_0] : memref<8x100xf32, #tpu.memory_space<vmem>>, vector<8x100xf32>
    %1 = arith.truncf %0 : vector<8x100xf32> to vector<8x100xbf16>
    %c0_1 = arith.constant 0 : index
    %c0_2 = arith.constant 0 : index
    %2 = vector.load %arg2[%c0_1, %c0_2] : memref<100x64xbf16, #tpu.memory_space<vmem>>, vector<100x64xbf16>
    %cst = arith.constant dense<0.000000e+00> : vector<8x64xf32>
    %3 = tpu.matmul %1, %2, %cst {dimension_numbers = #tpu.dot_dimension_numbers<[1], [0], [0], [1], [0, 0, 1, 1], [], []>} : vector<8x100xbf16>, vector<100x64xbf16>, vector<8x64xf32> -> vector<8x64xf32>
    %c0_3 = arith.constant 0 : index
    %c0_4 = arith.constant 0 : index
    %4 = vector.load %arg3[%c0_3, %c0_4] : memref<1x64xf32, #tpu.memory_space<vmem>>, vector<1x64xf32>
    %5 = vector.broadcast %4 : vector<1x64xf32> to vector<8x64xf32>
    %6 = arith.addf %3, %5 : vector<8x64xf32>
    %cst_5 = arith.constant 0.000000e+00 : f32
    %7 = vector.broadcast %cst_5 : f32 to vector<8x64xf32>
    %8 = arith.maximumf %6, %7 : vector<8x64xf32>
    %9 = arith.truncf %8 : vector<8x64xf32> to vector<8x64xbf16>
    %c0_6 = arith.constant 0 : index
    %c0_7 = arith.constant 0 : index
    %10 = vector.load %arg4[%c0_6, %c0_7] : memref<64x64xbf16, #tpu.memory_space<vmem>>, vector<64x64xbf16>
    %cst_8 = arith.constant dense<0.000000e+00> : vector<8x64xf32>
    %11 = tpu.matmul %9, %10, %cst_8 {dimension_numbers = #tpu.dot_dimension_numbers<[1], [0], [0], [1], [0, 0, 1, 1], [], []>} : vector<8x64xbf16>, vector<64x64xbf16>, vector<8x64xf32> -> vector<8x64xf32>
    %c0_9 = arith.constant 0 : index
    %c0_10 = arith.constant 0 : index
    %12 = vector.load %arg5[%c0_9, %c0_10] : memref<1x64xf32, #tpu.memory_space<vmem>>, vector<1x64xf32>
    %13 = vector.broadcast %12 : vector<1x64xf32> to vector<8x64xf32>
    %14 = arith.addf %11, %13 : vector<8x64xf32>
    %cst_11 = arith.constant 0.000000e+00 : f32
    %15 = vector.broadcast %cst_11 : f32 to vector<8x64xf32>
    %16 = arith.maximumf %14, %15 : vector<8x64xf32>
    %17 = arith.truncf %16 : vector<8x64xf32> to vector<8x64xbf16>
    %c0_12 = arith.constant 0 : index
    %c0_13 = arith.constant 0 : index
    %18 = vector.load %arg6[%c0_12, %c0_13] : memref<64x100xbf16, #tpu.memory_space<vmem>>, vector<64x100xbf16>
    %cst_14 = arith.constant dense<0.000000e+00> : vector<8x100xf32>
    %19 = tpu.matmul %17, %18, %cst_14 {dimension_numbers = #tpu.dot_dimension_numbers<[1], [0], [0], [1], [0, 0, 1, 1], [], []>} : vector<8x64xbf16>, vector<64x100xbf16>, vector<8x100xf32> -> vector<8x100xf32>
    %c0_15 = arith.constant 0 : index
    %c0_16 = arith.constant 0 : index
    %20 = vector.load %arg7[%c0_15, %c0_16] : memref<1x100xf32, #tpu.memory_space<vmem>>, vector<1x100xf32>
    %21 = vector.broadcast %20 : vector<1x100xf32> to vector<8x100xf32>
    %22 = arith.addf %19, %21 : vector<8x100xf32>
    %23 = arith.truncf %22 : vector<8x100xf32> to vector<8x100xbf16>
    %c0_17 = arith.constant 0 : index
    %c0_18 = arith.constant 0 : index
    %24 = vector.load %arg8[%c0_17, %c0_18] : memref<8x100xbf16, #tpu.memory_space<vmem>>, vector<8x100xbf16>
    tpu.vector_store %arg8[%c0_17, %c0_18], %23 {strides = array<i32>} : memref<8x100xbf16, #tpu.memory_space<vmem>>, vector<8x100xbf16>,
    return
  }
  func.func @transform_0(%arg0: i32) -> (i32, i32) {
    %c0_i32 = arith.constant 0 : i32
    %c0_i32_0 = arith.constant 0 : i32
    return %arg0, %c0_i32 : i32, i32
  }
  func.func @transform_1(%arg0: i32) -> (i32, i32) {
    %c0_i32 = arith.constant 0 : i32
    %c0_i32_0 = arith.constant 0 : i32
    %c0_i32_1 = arith.constant 0 : i32
    return %c0_i32, %c0_i32_0 : i32, i32
  }
  func.func @transform_2(%arg0: i32) -> (i32, i32) {
    %c0_i32 = arith.constant 0 : i32
    %c0_i32_0 = arith.constant 0 : i32
    %c0_i32_1 = arith.constant 0 : i32
    return %c0_i32, %c0_i32_0 : i32, i32
  }
  func.func @transform_3(%arg0: i32) -> (i32, i32) {
    %c0_i32 = arith.constant 0 : i32
    %c0_i32_0 = arith.constant 0 : i32
    %c0_i32_1 = arith.constant 0 : i32
    return %c0_i32, %c0_i32_0 : i32, i32
  }
  func.func @transform_4(%arg0: i32) -> (i32, i32) {
    %c0_i32 = arith.constant 0 : i32
    %c0_i32_0 = arith.constant 0 : i32
    %c0_i32_1 = arith.constant 0 : i32
    return %c0_i32, %c0_i32_0 : i32, i32
  }
  func.func @transform_5(%arg0: i32) -> (i32, i32) {
    %c0_i32 = arith.constant 0 : i32
    %c0_i32_0 = arith.constant 0 : i32
    %c0_i32_1 = arith.constant 0 : i32
    return %c0_i32, %c0_i32_0 : i32, i32
  }
  func.func @transform_6(%arg0: i32) -> (i32, i32) {
    %c0_i32 = arith.constant 0 : i32
    %c0_i32_0 = arith.constant 0 : i32
    %c0_i32_1 = arith.constant 0 : i32
    return %c0_i32, %c0_i32_0 : i32, i32
  }
  func.func @transform_7(%arg0: i32) -> (i32, i32) {
    %c0_i32 = arith.constant 0 : i32
    %c0_i32_0 = arith.constant 0 : i32
    return %arg0, %c0_i32 : i32, i32
  }
}

</mosaic_0001>

<llo_original>
// kernel: tpu_custom_call.1
$region0: #{tpu_custom_call.1}
  #allocation0 [shape = 'u32[]', space=smem, size = 0x4, offset = 0x4, fixed_abs, tag = 'smem constant byte address 0x4 - core index']
  #allocation1 [shape = 'u32[144,128]{1,0:T(1,128)}', space=vmem, size = 0x12000, scoped, tag = 'internal scratch']
  %s0 = inlined_call_operand.vmem [shape: f32[8,100], index: 0, kind: input, shape index: {}]
  %s1 = inlined_call_operand.vmem [shape: bf16[100,64], index: 1, kind: input, shape index: {}]
  %s2 = inlined_call_operand.vmem [shape: f32[1,64], index: 2, kind: input, shape index: {}]
  %s3 = inlined_call_operand.vmem [shape: bf16[64,64], index: 3, kind: input, shape index: {}]
  %s4 = inlined_call_operand.vmem [shape: f32[1,64], index: 4, kind: input, shape index: {}]
  %s5 = inlined_call_operand.vmem [shape: bf16[64,100], index: 5, kind: input, shape index: {}]
  %s6 = inlined_call_operand.vmem [shape: f32[1,100], index: 6, kind: input, shape index: {}]
  %s7 = inlined_call_operand.hbm [shape: bf16[8,100], index: 7, kind: output, shape index: {}]
  %s8 = sld [smem:[#allocation0]]
  $region38: #{tpu_custom_call.1} parent=0
    _
  %s10 = ssub.s32 1, %s8
  %s11 = scalar_select 0, %s10, %s8
  $region1: #{tpu_custom_call.1} parent=0
    #allocation2 [shape = 'u8[2048]{0}', space=vmem, size = 0x800, scoped, tag = 'output window, operand 0, single buffered']
    #allocation3 [shape = 's32[1]{0}', space=sflag, size = 0x4, scoped, tag = 'scoped memory for tpu_custom_call.1']
    %12 = vsyncpa [#allocation3], 0
    // Predicated region
    $region2: #{tpu_custom_call.1} parent=1 // pred_check
      _
    $region3: #{tpu_custom_call.1} parent=1 // pred_check_branch
      %14 = sbr.rel (0) target = $region5
    $region4: #{tpu_custom_call.1} parent=1 // pred_region
      _
    $region5: #{tpu_custom_call.1} parent=1 // pred_fallthru
      _
    // Predicated region
    $region6: #{tpu_custom_call.1} parent=1 // pred_check
      _
    $region7: #{tpu_custom_call.1} parent=1 // pred_check_branch
      %16 = sbr.rel (0) target = $region9
    $region8: #{tpu_custom_call.1} parent=1 // pred_region
      _
    $region9: #{tpu_custom_call.1} parent=1 // pred_fallthru
      _
    // Predicated region
    $region10: #{tpu_custom_call.1} parent=1 // pred_check
      _
    $region11: #{tpu_custom_call.1} parent=1 // pred_check_branch
      %18 = sbr.rel (0) target = $region13
    $region12: #{tpu_custom_call.1} parent=1 // pred_region
      _
    $region13: #{tpu_custom_call.1} parent=1 // pred_fallthru
      _
    // Predicated region
    $region14: #{tpu_custom_call.1} parent=1 // pred_check
      _
    $region15: #{tpu_custom_call.1} parent=1 // pred_check_branch
      %20 = sbr.rel (0) target = $region17
    $region16: #{tpu_custom_call.1} parent=1 // pred_region
      _
    $region17: #{tpu_custom_call.1} parent=1 // pred_fallthru
      _
    // Predicated region
    $region18: #{tpu_custom_call.1} parent=1 // pred_check
      _
    $region19: #{tpu_custom_call.1} parent=1 // pred_check_branch
      %22 = sbr.rel (0) target = $region21
    $region20: #{tpu_custom_call.1} parent=1 // pred_region
      _
    $region21: #{tpu_custom_call.1} parent=1 // pred_fallthru
      _
    // Predicated region
    $region22: #{tpu_custom_call.1} parent=1 // pred_check
      _
    $region23: #{tpu_custom_call.1} parent=1 // pred_check_branch
      %24 = sbr.rel (0) target = $region25
    $region24: #{tpu_custom_call.1} parent=1 // pred_region
      _
    $region25: #{tpu_custom_call.1} parent=1 // pred_fallthru
      _
    // Predicated region
    $region26: #{tpu_custom_call.1} parent=1 // pred_check
      _
    $region27: #{tpu_custom_call.1} parent=1 // pred_check_branch
      %26 = sbr.rel (0) target = $region29
    $region28: #{tpu_custom_call.1} parent=1 // pred_region
      _
    $region29: #{tpu_custom_call.1} parent=1 // pred_fallthru
      _
    %v28 = vld [vmem:[%s0] sm:$0xff]
    %v29 = vpack.c.bf16 %v28, %v28
    %v30 = vld [vmem:[%s1] sm:$0xf]
    %v31 = vld [vmem:[%s1 + $0x4] sm:$0xf]
    %v32 = vld [vmem:[%s1 + $0x8] sm:$0xf]
    %v33 = vld [vmem:[%s1 + $0xc] sm:$0xf]
    %v34 = vld [vmem:[%s1 + $0x10] sm:$0xf]
    %v35 = vld [vmem:[%s1 + $0x14] sm:$0xf]
    %v36 = vld [vmem:[%s1 + $0x18] sm:$0xf]
    %v37 = vld [vmem:[%s1 + $0x1c] sm:$0xf]
    %v38 = vld [vmem:[%s1 + $0x20] sm:$0xf]
    %v39 = vld [vmem:[%s1 + $0x24] sm:$0xf]
    %v40 = vld [vmem:[%s1 + $0x28] sm:$0xf]
    %v41 = vld [vmem:[%s1 + $0x2c] sm:$0xf]
    %v42 = vld [vmem:[%s1 + $0x30] sm:$0x3]
    %v43 = vld [vmem:[%s2] sm:$0x1]
    %v45 = vlaneseq
    %v46 = vshrl.u32 %v45, 7
    %v47 = vsub.s32 0, %v46
    %v48 = vrot.slane %v43, %v47
    %v63 = vunpack.c.l.b16 %v30
    %v64 = vunpack.c.l.b16 %v31
    %v65 = vunpack.c.l.b16 %v32
    %v66 = vunpack.c.l.b16 %v33
    %v67 = vunpack.c.l.b16 %v34
    %v68 = vunpack.c.l.b16 %v35
    %v69 = vunpack.c.l.b16 %v36
    %v70 = vunpack.c.l.b16 %v37
    %v71 = vunpack.c.l.b16 %v38
    %v72 = vunpack.c.l.b16 %v39
    %v73 = vunpack.c.l.b16 %v40
    %v74 = vunpack.c.l.b16 %v41
    %v75 = vunpack.c.l.b16 %v42
    %v76 = vpack.c.b16 %v64, %v63
    %v77 = vpack.c.b16 %v66, %v65
    %v78 = vpack.c.b16 %v68, %v67
    %v79 = vpack.c.b16 %v70, %v69
    %v80 = vpack.c.b16 %v72, %v71
    %v81 = vpack.c.b16 %v74, %v73
    %v82 = vpack.c.b16 %v75, %v75
    %vm89 = vcmask 818176
    %v91 = vsel %vm89, %v29, 0
    %vm93 = vcmask 1041408
    %v95 = vsel %vm93, %v82, 0
    %97 = vmatprep.subr.bf16.mxu0 0
    %98 = vmatpush1.bf16.msra.mxu0 %v76
    %99 = vmatprep.subr.bf16.mxu0 0
    %100 = vmatpush1.bf16.msra.mxu0 %v77
    %101 = vmatprep.subr.bf16.mxu0 0
    %102 = vmatpush1.bf16.msra.mxu0 %v78
    %103 = vmatprep.subr.bf16.mxu0 0
    %104 = vmatpush1.bf16.msra.mxu0 %v79
    %105 = vmatprep.subr.bf16.mxu0 0
    %106 = vmatpush1.bf16.msra.mxu0 %v80
    %107 = vmatprep.subr.bf16.mxu0 0
    %108 = vmatpush1.bf16.msra.mxu0 %v81
    %109 = vmatprep.subr.bf16.mxu0 0
    %110 = vmatpush1.bf16.msra.mxu0 %v95
    %111 = vmatprep.subr.bf16.mxu0 0
    %112 = vmatpush1.bf16.msra.mxu0 0
    %113 = vmatprep.subr.bf16.mxu0 0
    %114 = vmatpush1.bf16.msra.mxu0 0
    %115 = vmatprep.subr.bf16.mxu0 0
    %116 = vmatpush1.bf16.msra.mxu0 0
    %117 = vmatprep.subr.bf16.mxu0 0
    %118 = vmatpush1.bf16.msra.mxu0 0
    %119 = vmatprep.subr.bf16.mxu0 0
    %120 = vmatpush1.bf16.msra.mxu0 0
    %121 = vmatprep.subr.bf16.mxu0 0
    %122 = vmatpush1.bf16.msra.mxu0 0
    %123 = vmatprep.subr.bf16.mxu0 0
    %124 = vmatpush1.bf16.msra.mxu0 0
    %125 = vmatprep.subr.bf16.mxu0 0
    %126 = vmatpush1.bf16.msra.mxu0 0
    %127 = vmatprep.subr.bf16.mxu0 0
    %128 = vmatpush1.bf16.msra.mxu0 0
    %129 = vmatprep.mubr.bf16.mxu0 0
    %130 = vmatmul.mubr.bf16.gmra.mrb[0].mxu0 %v91
    %v131 = vpop.f32.mrb[0].mxu0
    %v132 = vadd.f32 %v48, %v131
    %v133 = vpop.f32.mrb[0].mxu0
    %v134 = vpop.f32.mrb[0].mxu0
    %v135 = vpop.f32.mrb[0].mxu0
    %136 = vdwg.mxu0
    %v137 = vmax.f32 %v132, 0.0
    %v138 = vpack.c.bf16 %v137, %v137
    %v139 = vld [vmem:[%s3] sm:$0xf]
    %v140 = vld [vmem:[%s3 + $0x4] sm:$0xf]
    %v141 = vld [vmem:[%s3 + $0x8] sm:$0xf]
    %v142 = vld [vmem:[%s3 + $0xc] sm:$0xf]
    %v143 = vld [vmem:[%s3 + $0x10] sm:$0xf]
    %v144 = vld [vmem:[%s3 + $0x14] sm:$0xf]
    %v145 = vld [vmem:[%s3 + $0x18] sm:$0xf]
    %v146 = vld [vmem:[%s3 + $0x1c] sm:$0xf]
    %v147 = vld [vmem:[%s4] sm:$0x1]
    %v149 = vlaneseq
    %v150 = vshrl.u32 %v149, 7
    %v151 = vsub.s32 0, %v150
    %v152 = vrot.slane %v147, %v151
    %v162 = vunpack.c.l.b16 %v139
    %v163 = vunpack.c.l.b16 %v140
    %v164 = vunpack.c.l.b16 %v141
    %v165 = vunpack.c.l.b16 %v142
    %v166 = vunpack.c.l.b16 %v143
    %v167 = vunpack.c.l.b16 %v144
    %v168 = vunpack.c.l.b16 %v145
    %v169 = vunpack.c.l.b16 %v146
    %v170 = vpack.c.b16 %v163, %v162
    %v171 = vpack.c.b16 %v165, %v164
    %v172 = vpack.c.b16 %v167, %v166
    %v173 = vpack.c.b16 %v169, %v168
    %vm178 = vcmask 523264
    %v180 = vsel %vm178, %v138, 0
    %182 = vmatprep.subr.bf16.mxu0 0
    %183 = vmatpush1.bf16.msra.mxu0 %v170
    %184 = vmatprep.subr.bf16.mxu0 0
    %185 = vmatpush1.bf16.msra.mxu0 %v171
    %186 = vmatprep.subr.bf16.mxu0 0
    %187 = vmatpush1.bf16.msra.mxu0 %v172
    %188 = vmatprep.subr.bf16.mxu0 0
    %189 = vmatpush1.bf16.msra.mxu0 %v173
    %190 = vmatprep.subr.bf16.mxu0 0
    %191 = vmatpush1.bf16.msra.mxu0 0
    %192 = vmatprep.subr.bf16.mxu0 0
    %193 = vmatpush1.bf16.msra.mxu0 0
    %194 = vmatprep.subr.bf16.mxu0 0
    %195 = vmatpush1.bf16.msra.mxu0 0
    %196 = vmatprep.subr.bf16.mxu0 0
    %197 = vmatpush1.bf16.msra.mxu0 0
    %198 = vmatprep.subr.bf16.mxu0 0
    %199 = vmatpush1.bf16.msra.mxu0 0
    %200 = vmatprep.subr.bf16.mxu0 0
    %201 = vmatpush1.bf16.msra.mxu0 0
    %202 = vmatprep.subr.bf16.mxu0 0
    %203 = vmatpush1.bf16.msra.mxu0 0
    %204 = vmatprep.subr.bf16.mxu0 0
    %205 = vmatpush1.bf16.msra.mxu0 0
    %206 = vmatprep.subr.bf16.mxu0 0
    %207 = vmatpush1.bf16.msra.mxu0 0
    %208 = vmatprep.subr.bf16.mxu0 0
    %209 = vmatpush1.bf16.msra.mxu0 0
    %210 = vmatprep.subr.bf16.mxu0 0
    %211 = vmatpush1.bf16.msra.mxu0 0
    %212 = vmatprep.subr.bf16.mxu0 0
    %213 = vmatpush1.bf16.msra.mxu0 0
    %214 = vmatprep.mubr.bf16.mxu0 0
    %215 = vmatmul.mubr.bf16.gmra.mrb[0].mxu0 %v180
    %v216 = vpop.f32.mrb[0].mxu0
    %v217 = vadd.f32 %v152, %v216
    %v218 = vpop.f32.mrb[0].mxu0
    %v219 = vpop.f32.mrb[0].mxu0
    %v220 = vpop.f32.mrb[0].mxu0
    %221 = vdwg.mxu0
    %v222 = vmax.f32 %v217, 0.0
    %v223 = vpack.c.bf16 %v222, %v222
    %v224 = vld [vmem:[%s5] sm:$0xf]
    %v225 = vld [vmem:[%s5 + $0x4] sm:$0xf]
    %v226 = vld [vmem:[%s5 + $0x8] sm:$0xf]
    %v227 = vld [vmem:[%s5 + $0xc] sm:$0xf]
    %v228 = vld [vmem:[%s5 + $0x10] sm:$0xf]
    %v229 = vld [vmem:[%s5 + $0x14] sm:$0xf]
    %v230 = vld [vmem:[%s5 + $0x18] sm:$0xf]
    %v231 = vld [vmem:[%s5 + $0x1c] sm:$0xf]
    %v232 = vld [vmem:[%s6] sm:$0x1]
    %v234 = vlaneseq
    %v235 = vshrl.u32 %v234, 7
    %v236 = vsub.s32 0, %v235
    %v237 = vrot.slane %v232, %v236
    %v247 = vunpack.c.l.b16 %v224
    %v248 = vunpack.c.l.b16 %v225
    %v249 = vunpack.c.l.b16 %v226
    %v250 = vunpack.c.l.b16 %v227
    %v251 = vunpack.c.l.b16 %v228
    %v252 = vunpack.c.l.b16 %v229
    %v253 = vunpack.c.l.b16 %v230
    %v254 = vunpack.c.l.b16 %v231
    %v255 = vpack.c.b16 %v248, %v247
    %v256 = vpack.c.b16 %v250, %v249
    %v257 = vpack.c.b16 %v252, %v251
    %v258 = vpack.c.b16 %v254, %v253
    %v264 = vsel %vm178, %v223, 0
    %266 = vmatprep.subr.bf16.mxu0 0
    %267 = vmatpush1.bf16.msra.mxu0 %v255
    %268 = vmatprep.subr.bf16.mxu0 0
    %269 = vmatpush1.bf16.msra.mxu0 %v256
    %270 = vmatprep.subr.bf16.mxu0 0
    %271 = vmatpush1.bf16.msra.mxu0 %v257
    %272 = vmatprep.subr.bf16.mxu0 0
    %273 = vmatpush1.bf16.msra.mxu0 %v258
    %274 = vmatprep.subr.bf16.mxu0 0
    %275 = vmatpush1.bf16.msra.mxu0 0
    %276 = vmatprep.subr.bf16.mxu0 0
    %277 = vmatpush1.bf16.msra.mxu0 0
    %278 = vmatprep.subr.bf16.mxu0 0
    %279 = vmatpush1.bf16.msra.mxu0 0
    %280 = vmatprep.subr.bf16.mxu0 0
    %281 = vmatpush1.bf16.msra.mxu0 0
    %282 = vmatprep.subr.bf16.mxu0 0
    %283 = vmatpush1.bf16.msra.mxu0 0
    %284 = vmatprep.subr.bf16.mxu0 0
    %285 = vmatpush1.bf16.msra.mxu0 0
    %286 = vmatprep.subr.bf16.mxu0 0
    %287 = vmatpush1.bf16.msra.mxu0 0
    %288 = vmatprep.subr.bf16.mxu0 0
    %289 = vmatpush1.bf16.msra.mxu0 0
    %290 = vmatprep.subr.bf16.mxu0 0
    %291 = vmatpush1.bf16.msra.mxu0 0
    %292 = vmatprep.subr.bf16.mxu0 0
    %293 = vmatpush1.bf16.msra.mxu0 0
    %294 = vmatprep.subr.bf16.mxu0 0
    %295 = vmatpush1.bf16.msra.mxu0 0
    %296 = vmatprep.subr.bf16.mxu0 0
    %297 = vmatpush1.bf16.msra.mxu0 0
    %298 = vmatprep.mubr.bf16.mxu0 0
    %299 = vmatmul.mubr.bf16.gmra.mrb[0].mxu0 %v264
    %v300 = vpop.f32.mrb[0].mxu0
    %v301 = vadd.f32 %v237, %v300
    %v302 = vpop.f32.mrb[0].mxu0
    %v303 = vpop.f32.mrb[0].mxu0
    %v304 = vpop.f32.mrb[0].mxu0
    %305 = vdwg.mxu0
    %v306 = vpack.c.bf16 %v301, %v301
    %vm307 = vcmask 814080
    %308 = vst.msk [vmem:[#allocation2] sm:$0xf] %vm307, %v306
    // Predicated region
    $region30: #{tpu_custom_call.1} parent=1 // pred_check
      _
    $region31: #{tpu_custom_call.1} parent=1 // pred_check_branch
      %310 = sbr.rel (0) target = $region33
    $region32: #{tpu_custom_call.1} parent=1 // pred_region
      %s312 = ssub.s32 64, 64
      %313 = vsyncadd [#allocation3], %s312
      %s315 = sshll.u32 [#allocation2], 4
      %s316 = int_to_ptr.vmem [resolvable:$true] %s315
      %318 = dma.vmem_to_hbm [thread:$0]  %s316, 64, %s7, [#allocation3]
    $region33: #{tpu_custom_call.1} parent=1 // pred_fallthru
      _
    // Predicated region
    $region34: #{tpu_custom_call.1} parent=1 // pred_check
      _
    $region35: #{tpu_custom_call.1} parent=1 // pred_check_branch
      %320 = sbr.rel (0) target = $region37
    $region36: #{tpu_custom_call.1} parent=1 // pred_region
      %321 = dma.done [#allocation3], 64
    $region37: #{tpu_custom_call.1} parent=1 // pred_fallthru
      _
    %322 = vsyncpa [#allocation3], 1

</llo_original>
